<compile_context>
chip_gen: v7x
topology: tpu7x:2x2x1
jax: 0.10.0
libtpu: 0.0.40
codegen_flags: <defaults>
</compile_context>

<pallas_src>
import functools

import jax
import jax.numpy as jnp
from jax.experimental import pallas as pl
from jax.experimental.pallas import tpu as pltpu

_VMEM_LIMIT = 32 * 1024 * 1024  # plenty for these shapes; tune upward for big H
_LANE = 128


def _round_up(x, m):
    return (x + m - 1) // m * m


def _pick_time_chunk(T, max_chunk=32):
    """Largest chunk <= max_chunk that divides T (prefer sublane-dense multiples of 8)."""
    if T <= max_chunk:
        return T
    best = 0
    for tc in range(1, max_chunk + 1):
        if T % tc == 0 and tc % 8 == 0:
            best = tc
    return best if best > 0 else T


# --------------------- input projection: gates_x = x @ W_ih^T + b --------------

def _proj_kernel(x_ref, w_ref, b_ref, o_ref):
    o_ref[...] = (jnp.dot(x_ref[...], w_ref[...],
                          preferred_element_type=jnp.float32)
                  + b_ref[...]).astype(o_ref.dtype)


def input_projection(x_2d, w_t, bias):
    """x_2d: (M, in), w_t: (in, 4Hp), bias: (1, 4Hp) -> (M, 4Hp)."""
    M = x_2d.shape[0]
    G = w_t.shape[1]
    return pl.pallas_call(
        _proj_kernel,
        out_shape=jax.ShapeDtypeStruct((M, G), jnp.float32),
        compiler_params=pltpu.CompilerParams(vmem_limit_bytes=_VMEM_LIMIT),
    )(x_2d, w_t, bias)


# --------------------------- recurrent LSTM kernels ----------------------------

def _lstm_step(gx_t, whh, h_ref, c_ref, hp):
    """One LSTM cell update given precomputed input gates gx_t (B, 4Hp)."""
    g = gx_t + jnp.dot(h_ref[...], whh, preferred_element_type=jnp.float32)
    i_g = jax.nn.sigmoid(g[:, 0 * hp:1 * hp])
    f_g = jax.nn.sigmoid(g[:, 1 * hp:2 * hp])
    g_g = jnp.tanh(g[:, 2 * hp:3 * hp])
    o_g = jax.nn.sigmoid(g[:, 3 * hp:4 * hp])
    c_new = f_g * c_ref[...] + i_g * g_g
    h_new = o_g * jnp.tanh(c_new)
    c_ref[...] = c_new
    h_ref[...] = h_new
    return h_new


def _lstm_seq_kernel(gx_ref, whh_ref, out_ref, h_ref, c_ref, *, hp, tc):
    """Intermediate layer: emits the full hidden sequence for the next layer."""
    @pl.when(pl.program_id(0) == 0)
    def _():
        h_ref[...] = jnp.zeros_like(h_ref)
        c_ref[...] = jnp.zeros_like(c_ref)

    # Static, fully unrolled chunk of TC time steps (static lane/sublane slices).
    for t in range(tc):
        h_new = _lstm_step(gx_ref[:, t, :], whh_ref[...], h_ref, c_ref, hp)
        out_ref[:, t, :] = h_new.astype(out_ref.dtype)


def _lstm_last_fused_kernel(gx_ref, whh_ref, wfc_ref, bfc_ref, out_ref,
                            h_ref, c_ref, *, hp, tc):
    """Last layer: no per-step HBM writeback; fc fused at the final step."""
    chunk = pl.program_id(0)

    @pl.when(chunk == 0)
    def _():
        h_ref[...] = jnp.zeros_like(h_ref)
        c_ref[...] = jnp.zeros_like(c_ref)
        out_ref[...] = jnp.zeros_like(out_ref)

    for t in range(tc):
        _lstm_step(gx_ref[:, t, :], whh_ref[...], h_ref, c_ref, hp)

    @pl.when(chunk == pl.num_programs(0) - 1)
    def _():
        out_ref[...] = (jnp.dot(h_ref[...], wfc_ref[...],
                                preferred_element_type=jnp.float32)
                        + bfc_ref[...]).astype(out_ref.dtype)


def lstm_layer_hidden_seq(gates_x, whh_t, hp, tc):
    """gates_x: (B, T, 4Hp), whh_t: (Hp, 4Hp) -> hidden sequence (B, T, Hp)."""
    B, T, G = gates_x.shape
    assert T % tc == 0
    kernel = functools.partial(_lstm_seq_kernel, hp=hp, tc=tc)
    return pl.pallas_call(
        kernel,
        out_shape=jax.ShapeDtypeStruct((B, T, hp), jnp.float32),
        grid_spec=pltpu.PrefetchScalarGridSpec(
            num_scalar_prefetch=0,
            grid=(T // tc,),
            in_specs=[
                pl.BlockSpec((B, tc, G), lambda c: (0, c, 0)),   # gates_x chunk
                pl.BlockSpec((hp, G), lambda c: (0, 0)),         # W_hh^T (resident)
            ],
            out_specs=pl.BlockSpec((B, tc, hp), lambda c: (0, c, 0)),
            scratch_shapes=[pltpu.VMEM((B, hp), jnp.float32),    # h
                            pltpu.VMEM((B, hp), jnp.float32)],   # c
        ),
        compiler_params=pltpu.CompilerParams(
            dimension_semantics=("arbitrary",),     # time carries state
            vmem_limit_bytes=_VMEM_LIMIT),
    )(gates_x, whh_t)


def lstm_last_layer_fused(gates_x, whh_t, wfc_t, bfc, hp, op, tc):
    """Last layer + fused fc: returns (B, Op) = h_T @ W_fc^T + b_fc (lane-padded)."""
    B, T, G = gates_x.shape
    assert T % tc == 0
    kernel = functools.partial(_lstm_last_fused_kernel, hp=hp, tc=tc)
    # TODO(synk): for very large H on v7x (64 MiB VMEM) use bf16 weights and
    # single-buffer the constant weight blocks (pipeline_mode=pl.Buffered(1)).
    return pl.pallas_call(
        kernel,
        out_shape=jax.ShapeDtypeStruct((B, op), jnp.float32),
        grid_spec=pltpu.PrefetchScalarGridSpec(
            num_scalar_prefetch=0,
            grid=(T // tc,),
            in_specs=[
                pl.BlockSpec((B, tc, G), lambda c: (0, c, 0)),   # gates_x chunk
                pl.BlockSpec((hp, G), lambda c: (0, 0)),         # W_hh^T
                pl.BlockSpec((hp, op), lambda c: (0, 0)),        # W_fc^T
                pl.BlockSpec((1, op), lambda c: (0, 0)),         # b_fc
            ],
            out_specs=pl.BlockSpec((B, op), lambda c: (0, 0)),   # resident accumulator
            scratch_shapes=[pltpu.VMEM((B, hp), jnp.float32),
                            pltpu.VMEM((B, hp), jnp.float32)],
        ),
        compiler_params=pltpu.CompilerParams(
            dimension_semantics=("arbitrary",),
            vmem_limit_bytes=_VMEM_LIMIT),
    )(gates_x, whh_t, wfc_t, bfc)


# --------------------------- parameters & packing ------------------------------

def init_params(key, input_size, hidden_size, num_layers, output_size):
    """PyTorch-shaped raw parameters (uniform +-1/sqrt(H), like nn.LSTM/nn.Linear)."""
    H = hidden_size
    k = 1.0 / jnp.sqrt(jnp.float32(H))
    params = {"lstm": [], "fc": None}
    for layer in range(num_layers):
        in_sz = input_size if layer == 0 else H
        key, k1, k2, k3, k4 = jax.random.split(key, 5)
        w_ih = jax.random.uniform(k1, (4 * H, in_sz), jnp.float32, -k, k)
        w_hh = jax.random.uniform(k2, (4 * H, H), jnp.float32, -k, k)
        b_ih = jax.random.uniform(k3, (4 * H,), jnp.float32, -k, k)
        b_hh = jax.random.uniform(k4, (4 * H,), jnp.float32, -k, k)
        params["lstm"].append((w_ih, w_hh, b_ih, b_hh))
    key, k5, k6 = jax.random.split(key, 3)
    w_fc = jax.random.uniform(k5, (output_size, H), jnp.float32, -k, k)
    b_fc = jax.random.uniform(k6, (output_size,), jnp.float32, -k, k)
    params["fc"] = (w_fc, b_fc)
    return params


def _pack_gate_matrix(w, H, Hp, in_pad):
    """(4H, in) PyTorch gate-stacked weight -> transposed, gate-block-padded (in_pad, 4Hp)."""
    in_dim = w.shape[1]
    out = jnp.zeros((in_pad, 4 * Hp), jnp.float32)
    for k in range(4):
        out = out.at[:in_dim, k * Hp:k * Hp + H].set(w[k * H:(k + 1) * H, :].T)
    return out


def _pack_gate_bias(b, H, Hp):
    out = jnp.zeros((1, 4 * Hp), jnp.float32)
    for k in range(4):
        out = out.at[0, k * Hp:k * Hp + H].set(b[k * H:(k + 1) * H])
    return out


def pack_params(params, input_size, hidden_size, output_size):
    """Pre-transpose / lane-pad all weights once on the host."""
    H = hidden_size
    Hp = _round_up(H, _LANE)
    Op = _round_up(output_size, _LANE)
    packed = {"Hp": Hp, "Op": Op, "lstm": []}
    for layer, (w_ih, w_hh, b_ih, b_hh) in enumerate(params["lstm"]):
        in_pad = input_size if layer == 0 else Hp
        w_ih_t = _pack_gate_matrix(w_ih, H, Hp, in_pad)          # (in_pad, 4Hp)
        w_hh_t = _pack_gate_matrix(w_hh, H, Hp, Hp)              # (Hp, 4Hp)
        bias = _pack_gate_bias(b_ih + b_hh, H, Hp)               # (1, 4Hp)
        packed["lstm"].append((w_ih_t, w_hh_t, bias))
    w_fc, b_fc = params["fc"]
    O = w_fc.shape[0]
    w_fc_t = jnp.zeros((Hp, Op), jnp.float32).at[:H, :O].set(w_fc.T)
    b_fc_p = jnp.zeros((1, Op), jnp.float32).at[0, :O].set(b_fc)
    packed["fc"] = (w_fc_t, b_fc_p)
    return packed


# ------------------------------ model forward ----------------------------------

def lstm_model_forward(packed, x, output_size):
    """x: (B, T, input_size) batch_first, like the PyTorch module (eval mode)."""
    B, T, _ = x.shape
    Hp, Op = packed["Hp"], packed["Op"]
    tc = _pick_time_chunk(T)
    cur = x.astype(jnp.float32)                         # batch_first kept throughout
    n_layers = len(packed["lstm"])
    out_padded = None
    for li, (w_ih_t, w_hh_t, bias) in enumerate(packed["lstm"]):
        in_dim = cur.shape[-1]
        gates_x = input_projection(cur.reshape(B * T, in_dim), w_ih_t, bias)
        gates_x = gates_x.reshape(B, T, 4 * Hp)
        if li < n_layers - 1:
            cur = lstm_layer_hidden_seq(gates_x, w_hh_t, Hp, tc)   # (B, T, Hp)
            # TODO(synk): inter-layer dropout (p=0.2) omitted — eval-mode identity.
        else:
            w_fc_t, b_fc_p = packed["fc"]
            # final dropout(out[:, -1, :]) is identity in eval mode; fc fused here.
            out_padded = lstm_last_layer_fused(gates_x, w_hh_t, w_fc_t, b_fc_p,
                                               Hp, Op, tc)          # (B, Op)
    return out_padded[:, :output_size]


# --------------------------- reference (pure JAX) -------------------------------

def reference_forward(params, x, hidden_size):
    H = hidden_size
    h_seq = jnp.transpose(x, (1, 0, 2)).astype(jnp.float32)
    for (w_ih, w_hh, b_ih, b_hh) in params["lstm"]:
        T, B, _ = h_seq.shape
        h = jnp.zeros((B, H), jnp.float32)
        c = jnp.zeros((B, H), jnp.float32)
        outs = []
        for t in range(T):
            g = h_seq[t] @ w_ih.T + h @ w_hh.T + b_ih + b_hh
            i_g = jax.nn.sigmoid(g[:, 0 * H:1 * H])
            f_g = jax.nn.sigmoid(g[:, 1 * H:2 * H])
            g_g = jnp.tanh(g[:, 2 * H:3 * H])
            o_g = jax.nn.sigmoid(g[:, 3 * H:4 * H])
            c = f_g * c + i_g * g_g
            h = o_g * jnp.tanh(c)
            outs.append(h)
        h_seq = jnp.stack(outs, axis=0)
    w_fc, b_fc = params["fc"]
    return h_seq[-1] @ w_fc.T + b_fc


# ----------------------------------- main ---------------------------------------

if __name__ == "__main__":
    B, T = 2, 8
    input_size, hidden_size, num_layers, output_size = 8, 32, 2, 4

    key = jax.random.PRNGKey(0)
    pkey, xkey = jax.random.split(key)
    params = init_params(pkey, input_size, hidden_size, num_layers, output_size)
    packed = pack_params(params, input_size, hidden_size, output_size)
    x = jax.random.normal(xkey, (B, T, input_size), jnp.float32)

    out = lstm_model_forward(packed, x, output_size)
    out = jax.block_until_ready(out)

    ref = reference_forward(params, x, hidden_size)
    assert out.shape == (B, output_size)
    assert jnp.allclose(out, ref, atol=1e-4, rtol=1e-4), (out, ref)

    print("KERNEL_OK")
</pallas_src>

<mosaic_0001>
module attributes {stable_mosaic.version = 11 : i64} {
  func.func @_proj_kernel(%arg0: memref<16x8xf32, #tpu.memory_space<vmem>>, %arg1: memref<8x512xf32, #tpu.memory_space<vmem>>, %arg2: memref<1x512xf32, #tpu.memory_space<vmem>>, %arg3: memref<16x512xf32, #tpu.memory_space<vmem>>) attributes {dimension_semantics = [], scalar_prefetch = 0 : i64, scratch_operands = 0 : i64, tpu.core_type = #tpu.core_type<tc>} {
    %c0 = arith.constant 0 : index
    %c0_0 = arith.constant 0 : index
    %0 = vector.load %arg0[%c0, %c0_0] : memref<16x8xf32, #tpu.memory_space<vmem>>, vector<16x8xf32>
    %c0_1 = arith.constant 0 : index
    %c0_2 = arith.constant 0 : index
    %1 = vector.load %arg1[%c0_1, %c0_2] : memref<8x512xf32, #tpu.memory_space<vmem>>, vector<8x512xf32>
    %cst = arith.constant dense<0.000000e+00> : vector<16x512xf32>
    %2 = tpu.matmul %0, %1, %cst {dimension_numbers = #tpu.dot_dimension_numbers<[1], [0], [0], [1], [0, 0, 1, 1], [], []>} : vector<16x8xf32>, vector<8x512xf32>, vector<16x512xf32> -> vector<16x512xf32>
    %c0_3 = arith.constant 0 : index
    %c0_4 = arith.constant 0 : index
    %3 = vector.load %arg2[%c0_3, %c0_4] : memref<1x512xf32, #tpu.memory_space<vmem>>, vector<1x512xf32>
    %4 = vector.broadcast %3 : vector<1x512xf32> to vector<16x512xf32>
    %5 = arith.addf %2, %4 : vector<16x512xf32>
    %c0_5 = arith.constant 0 : index
    %c0_6 = arith.constant 0 : index
    %6 = vector.load %arg3[%c0_5, %c0_6] : memref<16x512xf32, #tpu.memory_space<vmem>>, vector<16x512xf32>
    tpu.vector_store %arg3[%c0_5, %c0_6], %5 {strides = array<i32>} : memref<16x512xf32, #tpu.memory_space<vmem>>, vector<16x512xf32>,
    return
  }
}

</mosaic_0001>

<llo_original>
// kernel: tpu_custom_call.1
$region0: #{tpu_custom_call.1}
  #allocation0 [shape = 'u32[]', space=smem, size = 0x4, offset = 0x4, fixed_abs, tag = 'smem constant byte address 0x4 - core index']
  #allocation1 [shape = 'u32[144,128]{1,0:T(1,128)}', space=vmem, size = 0x12000, scoped, tag = 'internal scratch']
  %s0 = inlined_call_operand.vmem [shape: f32[16,8], index: 0, kind: input, shape index: {}]
  %s1 = inlined_call_operand.hbm [shape: f32[8,512], index: 1, kind: input, shape index: {}]
  %s2 = inlined_call_operand.vmem [shape: f32[1,512], index: 2, kind: input, shape index: {}]
  %s3 = inlined_call_operand.hbm [shape: f32[16,512], index: 3, kind: output, shape index: {}]
  %s4 = sld [smem:[#allocation0]]
  $region26: #{tpu_custom_call.1} parent=0
    _
  %s6 = ssub.s32 1, %s4
  %s7 = scalar_select 0, %s6, %s4
  $region1: #{tpu_custom_call.1} parent=0
    #allocation2 [shape = 'u8[16384]{0}', space=vmem, size = 0x4000, scoped, tag = 'input window, operand 1, single buffered']
    #allocation3 [shape = 's32[1]{0}', space=sflag, size = 0x4, scoped, tag = 'scoped memory for tpu_custom_call.1']
    #allocation4 [shape = 's32[1]{0}', space=sflag, size = 0x4, scoped, tag = 'scoped memory for tpu_custom_call.1']
    #allocation5 [shape = 'u8[32768]{0}', space=vmem, size = 0x8000, scoped, tag = 'output window, operand 0, single buffered']
    %8 = vsyncpa [#allocation3], 0
    %9 = vsyncpa [#allocation4], 0
    // Predicated region
    $region2: #{tpu_custom_call.1} parent=1 // pred_check
      _
    $region3: #{tpu_custom_call.1} parent=1 // pred_check_branch
      %11 = sbr.rel (0) target = $region5
    $region4: #{tpu_custom_call.1} parent=1 // pred_region
      _
    $region5: #{tpu_custom_call.1} parent=1 // pred_fallthru
      _
    // Predicated region
    $region6: #{tpu_custom_call.1} parent=1 // pred_check
      _
    $region7: #{tpu_custom_call.1} parent=1 // pred_check_branch
      %13 = sbr.rel (0) target = $region9
    $region8: #{tpu_custom_call.1} parent=1 // pred_region
      %s15 = ssub.s32 512, 512
      %16 = vsyncadd [#allocation3], %s15
      %s18 = sshll.u32 [#allocation2], 4
      %s19 = int_to_ptr.vmem [resolvable:$true] %s18
      %21 = dma.hbm_to_vmem [thread:$0]  %s1, 512, %s19, [#allocation3]
    $region9: #{tpu_custom_call.1} parent=1 // pred_fallthru
      _
    // Predicated region
    $region10: #{tpu_custom_call.1} parent=1 // pred_check
      _
    $region11: #{tpu_custom_call.1} parent=1 // pred_check_branch
      %23 = sbr.rel (0) target = $region13
    $region12: #{tpu_custom_call.1} parent=1 // pred_region
      _
    $region13: #{tpu_custom_call.1} parent=1 // pred_fallthru
      _
    // Predicated region
    $region14: #{tpu_custom_call.1} parent=1 // pred_check
      _
    $region15: #{tpu_custom_call.1} parent=1 // pred_check_branch
      %25 = sbr.rel (0) target = $region17
    $region16: #{tpu_custom_call.1} parent=1 // pred_region
      %26 = dma.done [#allocation3], 512
    $region17: #{tpu_custom_call.1} parent=1 // pred_fallthru
      _
    %v27 = vld [vmem:[%s0] sm:$0xff]
    %v28 = vld [vmem:[%s0 + $0x8] sm:$0xff]
    %v29 = vld [vmem:[#allocation2] sm:$0xff]
    %v30 = vld [vmem:[#allocation2 + $0x8] sm:$0xff]
    %v31 = vld [vmem:[#allocation2 + $0x10] sm:$0xff]
    %v32 = vld [vmem:[#allocation2 + $0x18] sm:$0xff]
    %v33 = vld [vmem:[%s2] sm:$0xf]
    %v35 = vlaneseq
    %v36 = vshrl.u32 %v35, 7
    %v37 = vsub.s32 0, %v36
    %v38 = vrot.slane %v33, %v37
    %v39 = vlaneseq
    %v40 = vshrl.u32 %v39, 7
    %v41 = vsub.s32 1, %v40
    %v42 = vrot.slane %v33, %v41
    %v43 = vlaneseq
    %v44 = vshrl.u32 %v43, 7
    %v45 = vsub.s32 2, %v44
    %v46 = vrot.slane %v33, %v45
    %v47 = vlaneseq
    %v48 = vshrl.u32 %v47, 7
    %v49 = vsub.s32 3, %v48
    %v50 = vrot.slane %v33, %v49
    %vm55 = vcmask 64512
    %v57 = vsel %vm55, %v27, 0
    %v60 = vsel %vm55, %v28, 0
    %62 = vmatprep.subr.mxu0 %v30
    %63 = vmatpush1.msra.mxu0 %v29
    %64 = vmatprep.subr.mxu0 0.0
    %65 = vmatpush1.msra.mxu0 0.0
    %66 = vmatprep.subr.mxu0 0.0
    %67 = vmatpush1.msra.mxu0 0.0
    %68 = vmatprep.subr.mxu0 0.0
    %69 = vmatpush1.msra.mxu0 0.0
    %70 = vmatprep.subr.mxu0 0.0
    %71 = vmatpush1.msra.mxu0 0.0
    %72 = vmatprep.subr.mxu0 0.0
    %73 = vmatpush1.msra.mxu0 0.0
    %74 = vmatprep.subr.mxu0 0.0
    %75 = vmatpush1.msra.mxu0 0.0
    %76 = vmatprep.subr.mxu0 0.0
    %77 = vmatpush1.msra.mxu0 0.0
    %78 = vmatprep.subr.mxu0 0.0
    %79 = vmatpush1.msra.mxu0 0.0
    %80 = vmatprep.subr.mxu0 0.0
    %81 = vmatpush1.msra.mxu0 0.0
    %82 = vmatprep.subr.mxu0 0.0
    %83 = vmatpush1.msra.mxu0 0.0
    %84 = vmatprep.subr.mxu0 0.0
    %85 = vmatpush1.msra.mxu0 0.0
    %86 = vmatprep.subr.mxu0 0.0
    %87 = vmatpush1.msra.mxu0 0.0
    %88 = vmatprep.subr.mxu0 0.0
    %89 = vmatpush1.msra.mxu0 0.0
    %90 = vmatprep.subr.mxu0 0.0
    %91 = vmatpush1.msra.mxu0 0.0
    %92 = vmatprep.subr.mxu0 0.0
    %93 = vmatpush1.msra.mxu0 0.0
    %94 = vmatprep.subr.mxu0 0.0
    %95 = vmatpush1.msra.mxu0 0.0
    %96 = vmatprep.subr.mxu0 0.0
    %97 = vmatpush1.msra.mxu0 0.0
    %98 = vmatprep.subr.mxu0 0.0
    %99 = vmatpush1.msra.mxu0 0.0
    %100 = vmatprep.subr.mxu0 0.0
    %101 = vmatpush1.msra.mxu0 0.0
    %102 = vmatprep.subr.mxu0 0.0
    %103 = vmatpush1.msra.mxu0 0.0
    %104 = vmatprep.subr.mxu0 0.0
    %105 = vmatpush1.msra.mxu0 0.0
    %106 = vmatprep.subr.mxu0 0.0
    %107 = vmatpush1.msra.mxu0 0.0
    %108 = vmatprep.subr.mxu0 0.0
    %109 = vmatpush1.msra.mxu0 0.0
    %110 = vmatprep.subr.mxu0 0.0
    %111 = vmatpush1.msra.mxu0 0.0
    %112 = vmatprep.subr.mxu0 0.0
    %113 = vmatpush1.msra.mxu0 0.0
    %114 = vmatprep.subr.mxu0 0.0
    %115 = vmatpush1.msra.mxu0 0.0
    %116 = vmatprep.subr.mxu0 0.0
    %117 = vmatpush1.msra.mxu0 0.0
    %118 = vmatprep.subr.mxu0 0.0
    %119 = vmatpush1.msra.mxu0 0.0
    %120 = vmatprep.subr.mxu0 0.0
    %121 = vmatpush1.msra.mxu0 0.0
    %122 = vmatprep.subr.mxu0 0.0
    %123 = vmatpush1.msra.mxu0 0.0
    %124 = vmatprep.subr.mxu0 0.0
    %125 = vmatpush1.msra.mxu0 0.0
    %126 = vmatprep.mubr.f32.mxu0 0.0
    %127 = vmatmul.mubr.f32.gmra.mrb[0].mxu0 %v57
    %v128 = vpop.f32.mrb[0].mxu0
    %v129 = vadd.f32 %v38, %v128
    %v130 = vpop.f32.mrb[0].mxu0
    %v131 = vadd.f32 %v42, %v130
    %132 = vmatprep.mubr.f32.mxu0 0.0
    %133 = vmatmul.mubr.f32.gmra.mrb[0].mxu0 %v60
    %v134 = vpop.f32.mrb[0].mxu0
    %v135 = vadd.f32 %v38, %v134
    %v136 = vpop.f32.mrb[0].mxu0
    %v137 = vadd.f32 %v42, %v136
    %138 = vdwg.mxu0
    %139 = vmatprep.subr.mxu0 %v32
    %140 = vmatpush1.msra.mxu0 %v31
    %141 = vmatprep.subr.mxu0 0.0
    %142 = vmatpush1.msra.mxu0 0.0
    %143 = vmatprep.subr.mxu0 0.0
    %144 = vmatpush1.msra.mxu0 0.0
    %145 = vmatprep.subr.mxu0 0.0
    %146 = vmatpush1.msra.mxu0 0.0
    %147 = vmatprep.subr.mxu0 0.0
    %148 = vmatpush1.msra.mxu0 0.0
    %149 = vmatprep.subr.mxu0 0.0
    %150 = vmatpush1.msra.mxu0 0.0
    %151 = vmatprep.subr.mxu0 0.0
    %152 = vmatpush1.msra.mxu0 0.0
    %153 = vmatprep.subr.mxu0 0.0
    %154 = vmatpush1.msra.mxu0 0.0
    %155 = vmatprep.subr.mxu0 0.0
    %156 = vmatpush1.msra.mxu0 0.0
    %157 = vmatprep.subr.mxu0 0.0
    %158 = vmatpush1.msra.mxu0 0.0
    %159 = vmatprep.subr.mxu0 0.0
    %160 = vmatpush1.msra.mxu0 0.0
    %161 = vmatprep.subr.mxu0 0.0
    %162 = vmatpush1.msra.mxu0 0.0
    %163 = vmatprep.subr.mxu0 0.0
    %164 = vmatpush1.msra.mxu0 0.0
    %165 = vmatprep.subr.mxu0 0.0
    %166 = vmatpush1.msra.mxu0 0.0
    %167 = vmatprep.subr.mxu0 0.0
    %168 = vmatpush1.msra.mxu0 0.0
    %169 = vmatprep.subr.mxu0 0.0
    %170 = vmatpush1.msra.mxu0 0.0
    %171 = vmatprep.subr.mxu0 0.0
    %172 = vmatpush1.msra.mxu0 0.0
    %173 = vmatprep.subr.mxu0 0.0
    %174 = vmatpush1.msra.mxu0 0.0
    %175 = vmatprep.subr.mxu0 0.0
    %176 = vmatpush1.msra.mxu0 0.0
    %177 = vmatprep.subr.mxu0 0.0
    %178 = vmatpush1.msra.mxu0 0.0
    %179 = vmatprep.subr.mxu0 0.0
    %180 = vmatpush1.msra.mxu0 0.0
    %181 = vmatprep.subr.mxu0 0.0
    %182 = vmatpush1.msra.mxu0 0.0
    %183 = vmatprep.subr.mxu0 0.0
    %184 = vmatpush1.msra.mxu0 0.0
    %185 = vmatprep.subr.mxu0 0.0
    %186 = vmatpush1.msra.mxu0 0.0
    %187 = vmatprep.subr.mxu0 0.0
    %188 = vmatpush1.msra.mxu0 0.0
    %189 = vmatprep.subr.mxu0 0.0
    %190 = vmatpush1.msra.mxu0 0.0
    %191 = vmatprep.subr.mxu0 0.0
    %192 = vmatpush1.msra.mxu0 0.0
    %193 = vmatprep.subr.mxu0 0.0
    %194 = vmatpush1.msra.mxu0 0.0
    %195 = vmatprep.subr.mxu0 0.0
    %196 = vmatpush1.msra.mxu0 0.0
    %197 = vmatprep.subr.mxu0 0.0
    %198 = vmatpush1.msra.mxu0 0.0
    %199 = vmatprep.subr.mxu0 0.0
    %200 = vmatpush1.msra.mxu0 0.0
    %201 = vmatprep.subr.mxu0 0.0
    %202 = vmatpush1.msra.mxu0 0.0
    %203 = vmatprep.mubr.f32.mxu0 0.0
    %204 = vmatmul.mubr.f32.gmra.mrb[0].mxu0 %v57
    %v205 = vpop.f32.mrb[0].mxu0
    %v206 = vadd.f32 %v46, %v205
    %v207 = vpop.f32.mrb[0].mxu0
    %v208 = vadd.f32 %v50, %v207
    %209 = vmatprep.mubr.f32.mxu0 0.0
    %210 = vmatmul.mubr.f32.gmra.mrb[0].mxu0 %v60
    %v211 = vpop.f32.mrb[0].mxu0
    %v212 = vadd.f32 %v46, %v211
    %v213 = vpop.f32.mrb[0].mxu0
    %v214 = vadd.f32 %v50, %v213
    %215 = vdwg.mxu0
    %216 = vst [vmem:[#allocation5] sm:$0xff] %v129
    %217 = vst [vmem:[#allocation5 + $0x8] sm:$0xff] %v131
    %218 = vst [vmem:[#allocation5 + $0x10] sm:$0xff] %v206
    %219 = vst [vmem:[#allocation5 + $0x18] sm:$0xff] %v208
    %220 = vst [vmem:[#allocation5 + $0x20] sm:$0xff] %v135
    %221 = vst [vmem:[#allocation5 + $0x28] sm:$0xff] %v137
    %222 = vst [vmem:[#allocation5 + $0x30] sm:$0xff] %v212
    %223 = vst [vmem:[#allocation5 + $0x38] sm:$0xff] %v214
    // Predicated region
    $region18: #{tpu_custom_call.1} parent=1 // pred_check
      _
    $region19: #{tpu_custom_call.1} parent=1 // pred_check_branch
      %225 = sbr.rel (0) target = $region21
    $region20: #{tpu_custom_call.1} parent=1 // pred_region
      %s227 = ssub.s32 1024, 1024
      %228 = vsyncadd [#allocation4], %s227
      %s229 = sshll.u32 [#allocation5], 4
      %s230 = int_to_ptr.vmem [resolvable:$true] %s229
      %235 = dma.vmem_to_hbm [thread:$0]  %s230, 1024, %s3, [#allocation4], 512, 512, 32
    $region21: #{tpu_custom_call.1} parent=1 // pred_fallthru
      _
    // Predicated region
    $region22: #{tpu_custom_call.1} parent=1 // pred_check
      _
    $region23: #{tpu_custom_call.1} parent=1 // pred_check_branch
      %237 = sbr.rel (0) target = $region25
    $region24: #{tpu_custom_call.1} parent=1 // pred_region
      %238 = dma.done [#allocation4], 1024
    $region25: #{tpu_custom_call.1} parent=1 // pred_fallthru
      _
    %239 = vsyncpa [#allocation3], 1
    %240 = vsyncpa [#allocation4], 1

</llo_original>
